<compile_context>
chip_gen: v7x
topology: tpu7x:2x2x1
jax: 0.10.0
libtpu: 0.0.40
codegen_flags: <defaults>
</compile_context>

<pallas_src>
import functools

import jax
import jax.numpy as jnp
from jax.experimental import pallas as pl
from jax.experimental.pallas import tpu as pltpu

LEAKY_SLOPE = 0.01  # nn.LeakyReLU default negative_slope
LANE = 128


def _leaky_relu(x):
    return jnp.where(x > 0, x, LEAKY_SLOPE * x)


def _round_up(x, m):
    return (x + m - 1) // m * m


# ---------------------------------------------------------------------------
# Kernel 1: per-batch channel-wise sums of xa = x0 + x1, accumulated over row
# tiles (restructured global-attention branch prerequisite).
# ---------------------------------------------------------------------------
def maff_colsum_kernel(x0_ref, x1_ref, sum_ref):
    t = pl.program_id(1)

    @pl.when(t == 0)
    def _():
        sum_ref[...] = jnp.zeros_like(sum_ref)

    xa = x0_ref[...].astype(jnp.float32) + x1_ref[...].astype(jnp.float32)
    sum_ref[...] += jnp.sum(xa, axis=1, keepdims=True)  # (Nb, 1, Cp)


# ---------------------------------------------------------------------------
# Kernel 2: local attention branch + sigmoid blend for one (batch-block, row-tile).
# ---------------------------------------------------------------------------
def maff_fuse_kernel(x0_ref, x1_ref, xg_ref, w1_ref, b1_ref, w2_ref, b2_ref,
                     o_ref, *, mm_dtype):
    x0 = x0_ref[...].astype(jnp.float32)        # (Nb, TR, Cp)
    x1 = x1_ref[...].astype(jnp.float32)
    xa = x0 + x1

    nb, tr, cp = xa.shape
    # Merge batch and row dims so the MXU sees a tall (Nb*TR, Cp) LHS.
    xa2 = xa.reshape(nb * tr, cp)
    h = jnp.dot(xa2.astype(mm_dtype), w1_ref[...],
                preferred_element_type=jnp.float32)
    h = _leaky_relu(h + b1_ref[...])
    xl = jnp.dot(h.astype(mm_dtype), w2_ref[...],
                 preferred_element_type=jnp.float32)
    xl = (xl + b2_ref[...]).reshape(nb, tr, cp)

    wei = jax.nn.sigmoid(xl + xg_ref[...].astype(jnp.float32))  # (Nb,1,Cp) bcast
    # out = x0 * wei + x1 * (1 - wei) rewritten with one fewer multiply.
    o_ref[...] = (x1 + (x0 - x1) * wei).astype(o_ref.dtype)


# ---------------------------------------------------------------------------
# Host glue
# ---------------------------------------------------------------------------
def fold_conv_bn(w, b, gamma, beta, mean, var, eps=1e-5):
    """Fold a 1x1 Conv2d (w: (Cout, Cin), b: (Cout,)) with an eval-mode BN."""
    s = gamma / jnp.sqrt(var + eps)
    return w * s[:, None], (b - mean) * s + beta


def _pad_matmul_params(w, b, cin_p, cout_p, mm_dtype):
    """(Cout, Cin) conv weight -> zero-padded (Cin_p, Cout_p) matrix + (1, Cout_p) bias."""
    cout, cin = w.shape
    wt = jnp.zeros((cin_p, cout_p), jnp.float32).at[:cin, :cout].set(w.T)
    bp = jnp.zeros((1, cout_p), jnp.float32).at[:, :cout].set(b)
    return wt.astype(mm_dtype), bp


def _pick_batch_block(n, row_tile, target_rows=512):
    """Largest divisor of n with nb * row_tile <= target_rows (fill the MXU M-dim)."""
    nb = 1
    for d in range(1, n + 1):
        if n % d == 0 and d * row_tile <= target_rows:
            nb = d
    return nb


def maff_forward(x0_nchw, x1_nchw, params, *, mm_dtype=jnp.bfloat16,
                 max_row_tile=512):
    """x0/x1 in NCHW (PyTorch convention). Returns NCHW output."""
    N, C, H, W = x0_nchw.shape
    HW = H * W
    C1 = params["l_w1"].shape[0]

    # ---- fold conv + eval-mode BN ----
    w1l, b1l = fold_conv_bn(params["l_w1"], params["l_b1"], params["l_bn1_g"],
                            params["l_bn1_b"], params["l_bn1_m"], params["l_bn1_v"])
    w2l, b2l = fold_conv_bn(params["l_w2"], params["l_b2"], params["l_bn2_g"],
                            params["l_bn2_b"], params["l_bn2_m"], params["l_bn2_v"])
    w1g, b1g = fold_conv_bn(params["g_w1"], params["g_b1"], params["g_bn1_g"],
                            params["g_bn1_b"], params["g_bn1_m"], params["g_bn1_v"])
    w2g, b2g = fold_conv_bn(params["g_w2"], params["g_b2"], params["g_bn2_g"],
                            params["g_bn2_b"], params["g_bn2_m"], params["g_bn2_v"])

    # ---- lane-dense padded sizes & tiling ----
    Cp = _round_up(C, LANE)                      # channels on the lane axis
    C1p = _round_up(C1, LANE)                    # intermediate channels -> full lanes
    TR = min(max_row_tile, _round_up(HW, 8))     # rows per tile (sublane multiple)
    HWp = _round_up(HW, TR)
    n_tiles = HWp // TR
    Nb = _pick_batch_block(N, TR)                # batch elems folded per grid step

    w1l_p, b1l_p = _pad_matmul_params(w1l, b1l, Cp, C1p, mm_dtype)
    w2l_p, b2l_p = _pad_matmul_params(w2l, b2l, C1p, Cp, mm_dtype)
    w1g_p, b1g_p = _pad_matmul_params(w1g, b1g, Cp, C1p, mm_dtype)
    w2g_p, b2g_p = _pad_matmul_params(w2g, b2g, C1p, Cp, mm_dtype)

    # NCHW -> (N, HWp, Cp); padded rows/channels are exact zeros (inert through
    # the folded weights, and sliced away at the end).
    def to_rows(x):
        r = jnp.transpose(x, (0, 2, 3, 1)).reshape(N, HW, C)
        return jnp.pad(r, ((0, 0), (0, HWp - HW), (0, Cp - C)))

    x0r = to_rows(x0_nchw)
    x1r = to_rows(x1_nchw)

    # ---- VMEM budget (explicit, instead of the default scoped limit) ----
    itemsize = jnp.dtype(x0r.dtype).itemsize
    io_block = Nb * TR * Cp * itemsize
    vmem_need = (2 * 3 * io_block                                    # x0/x1/out, dbl-buffered
                 + 2 * Nb * Cp * 4                                   # xg block
                 + 2 * (Cp * C1p + C1p * Cp) * jnp.dtype(mm_dtype).itemsize
                 + 4 * Nb * TR * max(Cp, C1p) * 4)                   # f32 intermediates
    vmem_limit = int(min(64 * 2 ** 20, max(16 * 2 ** 20, 2 * vmem_need)))

    # ---- pass 1: per-batch channel sums of xa over tiled rows ----
    xsum = pl.pallas_call(
        maff_colsum_kernel,
        out_shape=jax.ShapeDtypeStruct((N, 1, Cp), jnp.float32),
        grid_spec=pltpu.PrefetchScalarGridSpec(
            num_scalar_prefetch=0,
            grid=(N // Nb, n_tiles),
            in_specs=[pl.BlockSpec((Nb, TR, Cp), lambda b, t: (b, t, 0)),
                      pl.BlockSpec((Nb, TR, Cp), lambda b, t: (b, t, 0))],
            out_specs=pl.BlockSpec((Nb, 1, Cp), lambda b, t: (b, 0, 0)),
        ),
        compiler_params=pltpu.CompilerParams(
            dimension_semantics=("parallel", "arbitrary"),
            vmem_limit_bytes=vmem_limit),
    )(x0r, x1r)

    # Global attention branch: tiny (N, Cp) MLP, batched over all N at once
    # (keeps 1-row matmuls off the per-tile MXU critical path).
    g = xsum[:, 0, :] / float(HW)
    gh = _leaky_relu(jnp.dot(g.astype(mm_dtype), w1g_p,
                             preferred_element_type=jnp.float32) + b1g_p)
    xg = jnp.dot(gh.astype(mm_dtype), w2g_p,
                 preferred_element_type=jnp.float32) + b2g_p
    xg = xg[:, None, :]                                              # (N, 1, Cp) f32

    # ---- pass 2: local attention + weighted blend, tiled over (batch, rows) ----
    out_p = pl.pallas_call(
        functools.partial(maff_fuse_kernel, mm_dtype=mm_dtype),
        out_shape=jax.ShapeDtypeStruct((N, HWp, Cp), x0r.dtype),
        grid_spec=pltpu.PrefetchScalarGridSpec(
            num_scalar_prefetch=0,
            grid=(N // Nb, n_tiles),
            in_specs=[
                pl.BlockSpec((Nb, TR, Cp), lambda b, t: (b, t, 0)),   # x0
                pl.BlockSpec((Nb, TR, Cp), lambda b, t: (b, t, 0)),   # x1
                pl.BlockSpec((Nb, 1, Cp), lambda b, t: (b, 0, 0)),    # xg (per-batch)
                pl.BlockSpec((Cp, C1p), lambda b, t: (0, 0)),         # w1 (folded, padded)
                pl.BlockSpec((1, C1p), lambda b, t: (0, 0)),          # b1
                pl.BlockSpec((C1p, Cp), lambda b, t: (0, 0)),         # w2
                pl.BlockSpec((1, Cp), lambda b, t: (0, 0)),           # b2
            ],
            out_specs=pl.BlockSpec((Nb, TR, Cp), lambda b, t: (b, t, 0)),
        ),
        compiler_params=pltpu.CompilerParams(
            dimension_semantics=("parallel", "parallel"),
            vmem_limit_bytes=vmem_limit),
    )(x0r, x1r, xg, w1l_p, b1l_p, w2l_p, b2l_p)

    out = out_p[:, :HW, :C].reshape(N, H, W, C)
    return jnp.transpose(out, (0, 3, 1, 2))


# ---------------------------------------------------------------------------
# Pure-JAX reference (same folded-BN eval semantics, all-f32) for validation
# ---------------------------------------------------------------------------
def maff_reference(x0_nchw, x1_nchw, params):
    N, C, H, W = x0_nchw.shape
    x0 = jnp.transpose(x0_nchw, (0, 2, 3, 1)).reshape(N, H * W, C)
    x1 = jnp.transpose(x1_nchw, (0, 2, 3, 1)).reshape(N, H * W, C)
    xa = x0 + x1

    w1l, b1l = fold_conv_bn(params["l_w1"], params["l_b1"], params["l_bn1_g"],
                            params["l_bn1_b"], params["l_bn1_m"], params["l_bn1_v"])
    w2l, b2l = fold_conv_bn(params["l_w2"], params["l_b2"], params["l_bn2_g"],
                            params["l_bn2_b"], params["l_bn2_m"], params["l_bn2_v"])
    w1g, b1g = fold_conv_bn(params["g_w1"], params["g_b1"], params["g_bn1_g"],
                            params["g_bn1_b"], params["g_bn1_m"], params["g_bn1_v"])
    w2g, b2g = fold_conv_bn(params["g_w2"], params["g_b2"], params["g_bn2_g"],
                            params["g_bn2_b"], params["g_bn2_m"], params["g_bn2_v"])

    xl = _leaky_relu(xa @ w1l.T + b1l) @ w2l.T + b2l
    g = jnp.mean(xa, axis=1, keepdims=True)
    xg = _leaky_relu(g @ w1g.T + b1g) @ w2g.T + b2g
    wei = jax.nn.sigmoid(xl + xg)
    out = x0 * wei + x1 * (1.0 - wei)
    return jnp.transpose(out.reshape(N, H, W, C), (0, 3, 1, 2))


def make_params(key, channels, ratio1):
    inter = channels // ratio1
    keys = jax.random.split(key, 12)
    p = {}
    p["l_w1"] = 0.1 * jax.random.normal(keys[0], (inter, channels), jnp.float32)
    p["l_b1"] = 0.05 * jax.random.normal(keys[1], (inter,), jnp.float32)
    p["l_w2"] = 0.1 * jax.random.normal(keys[2], (channels, inter), jnp.float32)
    p["l_b2"] = 0.05 * jax.random.normal(keys[3], (channels,), jnp.float32)
    p["l_bn1_g"] = 1.0 + 0.1 * jax.random.normal(keys[4], (inter,), jnp.float32)
    p["l_bn1_b"] = 0.1 * jax.random.normal(keys[5], (inter,), jnp.float32)
    p["l_bn1_m"] = jnp.zeros((inter,), jnp.float32)
    p["l_bn1_v"] = jnp.ones((inter,), jnp.float32)
    p["l_bn2_g"] = jnp.ones((channels,), jnp.float32)
    p["l_bn2_b"] = jnp.zeros((channels,), jnp.float32)
    p["l_bn2_m"] = jnp.zeros((channels,), jnp.float32)
    p["l_bn2_v"] = jnp.ones((channels,), jnp.float32)
    p["g_w1"] = 0.1 * jax.random.normal(keys[6], (inter, channels), jnp.float32)
    p["g_b1"] = 0.05 * jax.random.normal(keys[7], (inter,), jnp.float32)
    p["g_w2"] = 0.1 * jax.random.normal(keys[8], (channels, inter), jnp.float32)
    p["g_b2"] = 0.05 * jax.random.normal(keys[9], (channels,), jnp.float32)
    p["g_bn1_g"] = 1.0 + 0.1 * jax.random.normal(keys[10], (inter,), jnp.float32)
    p["g_bn1_b"] = 0.1 * jax.random.normal(keys[11], (inter,), jnp.float32)
    p["g_bn1_m"] = jnp.zeros((inter,), jnp.float32)
    p["g_bn1_v"] = jnp.ones((inter,), jnp.float32)
    p["g_bn2_g"] = jnp.ones((channels,), jnp.float32)
    p["g_bn2_b"] = jnp.zeros((channels,), jnp.float32)
    p["g_bn2_m"] = jnp.zeros((channels,), jnp.float32)
    p["g_bn2_v"] = jnp.ones((channels,), jnp.float32)
    return p


if __name__ == "__main__":
    # Shapes consistent with the module: MAFF(channels=64, ratio1=4)
    N, C, H, W = 2, 64, 8, 8
    key = jax.random.PRNGKey(0)
    kx0, kx1, kp = jax.random.split(key, 3)
    x0 = jax.random.normal(kx0, (N, C, H, W), jnp.float32)
    x1 = jax.random.normal(kx1, (N, C, H, W), jnp.float32)
    params = make_params(kp, channels=C, ratio1=4)

    ref = maff_reference(x0, x1, params)

    # Semantic check: f32 matmuls, tight tolerance.
    out_f32 = jax.block_until_ready(maff_forward(x0, x1, params, mm_dtype=jnp.float32))
    assert out_f32.shape == (N, C, H, W)
    assert jnp.allclose(out_f32, ref, atol=1e-4, rtol=1e-4), "f32 kernel mismatch vs reference"

    # Performance path: bf16 matmuls with f32 accumulation (looser tolerance).
    out_bf16 = jax.block_until_ready(maff_forward(x0, x1, params, mm_dtype=jnp.bfloat16))
    assert out_bf16.shape == (N, C, H, W)
    assert jnp.allclose(out_bf16, ref, atol=5e-2, rtol=5e-2), "bf16 kernel mismatch vs reference"

    print("KERNEL_OK")
</pallas_src>

<mosaic_0001>
module attributes {stable_mosaic.version = 11 : i64} {
  func.func @maff_colsum_kernel(%arg0: i32, %arg1: i32, %arg2: memref<2x64x128xf32, #tpu.memory_space<vmem>>, %arg3: memref<2x64x128xf32, #tpu.memory_space<vmem>>, %arg4: memref<2x1x128xf32, #tpu.memory_space<vmem>>) attributes {dimension_semantics = [#tpu.dimension_semantics<parallel>, #tpu.dimension_semantics<arbitrary>], iteration_bounds = array<i64: 1, 1>, scalar_prefetch = 0 : i64, scratch_operands = 0 : i64, tpu.core_type = #tpu.core_type<tc>, window_params = [{transform_indices = @transform_0, window_bounds = array<i64: 2, 64, 128>}, {transform_indices = @transform_1, window_bounds = array<i64: 2, 64, 128>}, {transform_indices = @transform_2, window_bounds = array<i64: 2, 1, 128>}]} {
    %c0_i32 = arith.constant 0 : i32
    %0 = arith.cmpi eq, %arg1, %c0_i32 : i32
    %1 = arith.extui %0 : i1 to i32
    %c0_i32_0 = arith.constant 0 : i32
    %2 = arith.cmpi ne, %1, %c0_i32_0 : i32
    scf.if %2 {
      %cst_12 = arith.constant 0.000000e+00 : f32
      %11 = vector.broadcast %cst_12 : f32 to vector<2x1x128xf32>
      %c0_13 = arith.constant 0 : index
      %c0_14 = arith.constant 0 : index
      %c0_15 = arith.constant 0 : index
      %12 = vector.load %arg4[%c0_13, %c0_14, %c0_15] : memref<2x1x128xf32, #tpu.memory_space<vmem>>, vector<2x1x128xf32>
      tpu.vector_store %arg4[%c0_13, %c0_14, %c0_15], %11 {strides = array<i32>} : memref<2x1x128xf32, #tpu.memory_space<vmem>>, vector<2x1x128xf32>,
    } else {
    }
    %c0 = arith.constant 0 : index
    %c0_1 = arith.constant 0 : index
    %c0_2 = arith.constant 0 : index
    %3 = vector.load %arg2[%c0, %c0_1, %c0_2] : memref<2x64x128xf32, #tpu.memory_space<vmem>>, vector<2x64x128xf32>
    %c0_3 = arith.constant 0 : index
    %c0_4 = arith.constant 0 : index
    %c0_5 = arith.constant 0 : index
    %4 = vector.load %arg3[%c0_3, %c0_4, %c0_5] : memref<2x64x128xf32, #tpu.memory_space<vmem>>, vector<2x64x128xf32>
    %5 = arith.addf %3, %4 : vector<2x64x128xf32>
    %c0_6 = arith.constant 0 : index
    %c0_7 = arith.constant 0 : index
    %c0_8 = arith.constant 0 : index
    %6 = vector.load %arg4[%c0_6, %c0_7, %c0_8] : memref<2x1x128xf32, #tpu.memory_space<vmem>>, vector<2x1x128xf32>
    %cst = arith.constant dense<0.000000e+00> : vector<2x128xf32>
    %7 = vector.multi_reduction <add>, %5, %cst [1] : vector<2x64x128xf32> to vector<2x128xf32>
    %8 = vector.shape_cast %7 : vector<2x128xf32> to vector<2x1x128xf32>
    %9 = arith.addf %6, %8 : vector<2x1x128xf32>
    %c0_9 = arith.constant 0 : index
    %c0_10 = arith.constant 0 : index
    %c0_11 = arith.constant 0 : index
    %10 = vector.load %arg4[%c0_9, %c0_10, %c0_11] : memref<2x1x128xf32, #tpu.memory_space<vmem>>, vector<2x1x128xf32>
    tpu.vector_store %arg4[%c0_9, %c0_10, %c0_11], %9 {strides = array<i32>} : memref<2x1x128xf32, #tpu.memory_space<vmem>>, vector<2x1x128xf32>,
    return
  }
  func.func @transform_0(%arg0: i32, %arg1: i32) -> (i32, i32, i32) {
    %c0_i32 = arith.constant 0 : i32
    %c0_i32_0 = arith.constant 0 : i32
    return %arg0, %arg1, %c0_i32 : i32, i32, i32
  }
  func.func @transform_1(%arg0: i32, %arg1: i32) -> (i32, i32, i32) {
    %c0_i32 = arith.constant 0 : i32
    %c0_i32_0 = arith.constant 0 : i32
    return %arg0, %arg1, %c0_i32 : i32, i32, i32
  }
  func.func @transform_2(%arg0: i32, %arg1: i32) -> (i32, i32, i32) {
    %c0_i32 = arith.constant 0 : i32
    %c0_i32_0 = arith.constant 0 : i32
    %c0_i32_1 = arith.constant 0 : i32
    return %arg0, %c0_i32, %c0_i32_0 : i32, i32, i32
  }
}

</mosaic_0001>

<llo_original>
// kernel: tpu_custom_call.1
$region0: #{tpu_custom_call.1}
  #allocation0 [shape = 'u32[]', space=smem, size = 0x4, offset = 0x4, fixed_abs, tag = 'smem constant byte address 0x4 - core index']
  #allocation1 [shape = 'u32[144,128]{1,0:T(1,128)}', space=vmem, size = 0x12000, scoped, tag = 'internal scratch']
  %s0 = inlined_call_operand.hbm [shape: f32[2,64,128], index: 0, kind: input, shape index: {}]
  %s1 = inlined_call_operand.hbm [shape: f32[2,64,128], index: 1, kind: input, shape index: {}]
  %s2 = inlined_call_operand.hbm [shape: f32[2,1,128], index: 2, kind: output, shape index: {}]
  %s3 = sld [smem:[#allocation0]]
  $region30: #{tpu_custom_call.1} parent=0
    _
  %s5 = ssub.s32 1, %s3
  %s6 = scalar_select 0, %s5, %s3
  $region1: #{tpu_custom_call.1} parent=0
    #allocation2 [shape = 'u8[65536]{0}', space=vmem, size = 0x10000, scoped, tag = 'input window, operand 0, single buffered']
    #allocation3 [shape = 's32[1]{0}', space=sflag, size = 0x4, scoped, tag = 'scoped memory for tpu_custom_call.1']
    #allocation4 [shape = 's32[1]{0}', space=sflag, size = 0x4, scoped, tag = 'scoped memory for tpu_custom_call.1']
    #allocation5 [shape = 'u8[65536]{0}', space=vmem, size = 0x10000, scoped, tag = 'input window, operand 1, single buffered']
    #allocation6 [shape = 's32[1]{0}', space=sflag, size = 0x4, scoped, tag = 'scoped memory for tpu_custom_call.1']
    #allocation7 [shape = 'u8[1024]{0}', space=vmem, size = 0x400, scoped, tag = 'output window, operand 0, single buffered']
    %7 = vsyncpa [#allocation3], 0
    %8 = vsyncpa [#allocation6], 0
    %9 = vsyncpa [#allocation4], 0
    // Predicated region
    $region2: #{tpu_custom_call.1} parent=1 // pred_check
      _
    $region3: #{tpu_custom_call.1} parent=1 // pred_check_branch
      %11 = sbr.rel (0) target = $region5
    $region4: #{tpu_custom_call.1} parent=1 // pred_region
      %s13 = ssub.s32 2048, 2048
      %14 = vsyncadd [#allocation3], %s13
      %s15 = sshll.u32 [#allocation2], 4
      %s16 = int_to_ptr.vmem [resolvable:$true] %s15
      %21 = dma.hbm_to_vmem [thread:$0]  %s0, 2048, %s16, [#allocation3], 128, 128, 8
    $region5: #{tpu_custom_call.1} parent=1 // pred_fallthru
      _
    // Predicated region
    $region6: #{tpu_custom_call.1} parent=1 // pred_check
      _
    $region7: #{tpu_custom_call.1} parent=1 // pred_check_branch
      %23 = sbr.rel (0) target = $region9
    $region8: #{tpu_custom_call.1} parent=1 // pred_region
      %s25 = ssub.s32 2048, 2048
      %26 = vsyncadd [#allocation6], %s25
      %s27 = sshll.u32 [#allocation5], 4
      %s28 = int_to_ptr.vmem [resolvable:$true] %s27
      %33 = dma.hbm_to_vmem [thread:$0]  %s1, 2048, %s28, [#allocation6], 128, 128, 8
    $region9: #{tpu_custom_call.1} parent=1 // pred_fallthru
      _
    // Predicated region
    $region10: #{tpu_custom_call.1} parent=1 // pred_check
      _
    $region11: #{tpu_custom_call.1} parent=1 // pred_check_branch
      %35 = sbr.rel (0) target = $region13
    $region12: #{tpu_custom_call.1} parent=1 // pred_region
      %36 = dma.done [#allocation3], 2048
    $region13: #{tpu_custom_call.1} parent=1 // pred_fallthru
      _
    // Predicated region
    $region14: #{tpu_custom_call.1} parent=1 // pred_check
      _
    $region15: #{tpu_custom_call.1} parent=1 // pred_check_branch
      %38 = sbr.rel (0) target = $region17
    $region16: #{tpu_custom_call.1} parent=1 // pred_region
      %39 = dma.done [#allocation6], 2048
    $region17: #{tpu_custom_call.1} parent=1 // pred_fallthru
      _
    %p40 = scmp.eq.s32.totalorder 0, 0
    // Predicated region
    $region18: #{tpu_custom_call.1} parent=1 // pred_check
      %p41 = pneg %p40
    $region19: #{tpu_custom_call.1} parent=1 // pred_check_branch
      %43 = sbr.rel (%p41) target = $region21
    $region20: #{tpu_custom_call.1} parent=1 // pred_region
      %44 = vst [vmem:[#allocation7] sm:$0x1] 0.0
      %45 = vst [vmem:[#allocation7 + $0x1] sm:$0x1] 0.0
    $region21: #{tpu_custom_call.1} parent=1 // pred_fallthru
      _
    %v46 = vld [vmem:[#allocation2] sm:$0xff]
    %v47 = vld [vmem:[#allocation2 + $0x8] sm:$0xff]
    %v48 = vld [vmem:[#allocation2 + $0x10] sm:$0xff]
    %v49 = vld [vmem:[#allocation2 + $0x18] sm:$0xff]
    %v50 = vld [vmem:[#allocation2 + $0x20] sm:$0xff]
    %v51 = vld [vmem:[#allocation2 + $0x28] sm:$0xff]
    %v52 = vld [vmem:[#allocation2 + $0x30] sm:$0xff]
    %v53 = vld [vmem:[#allocation2 + $0x38] sm:$0xff]
    %v54 = vld [vmem:[#allocation2 + $0x40] sm:$0xff]
    %v55 = vld [vmem:[#allocation2 + $0x48] sm:$0xff]
    %v56 = vld [vmem:[#allocation2 + $0x50] sm:$0xff]
    %v57 = vld [vmem:[#allocation2 + $0x58] sm:$0xff]
    %v58 = vld [vmem:[#allocation2 + $0x60] sm:$0xff]
    %v59 = vld [vmem:[#allocation2 + $0x68] sm:$0xff]
    %v60 = vld [vmem:[#allocation2 + $0x70] sm:$0xff]
    %v61 = vld [vmem:[#allocation2 + $0x78] sm:$0xff]
    %v62 = vld [vmem:[#allocation5] sm:$0xff]
    %v63 = vld [vmem:[#allocation5 + $0x8] sm:$0xff]
    %v64 = vld [vmem:[#allocation5 + $0x10] sm:$0xff]
    %v65 = vld [vmem:[#allocation5 + $0x18] sm:$0xff]
    %v66 = vld [vmem:[#allocation5 + $0x20] sm:$0xff]
    %v67 = vld [vmem:[#allocation5 + $0x28] sm:$0xff]
    %v68 = vld [vmem:[#allocation5 + $0x30] sm:$0xff]
    %v69 = vld [vmem:[#allocation5 + $0x38] sm:$0xff]
    %v70 = vld [vmem:[#allocation5 + $0x40] sm:$0xff]
    %v71 = vld [vmem:[#allocation5 + $0x48] sm:$0xff]
    %v72 = vld [vmem:[#allocation5 + $0x50] sm:$0xff]
    %v73 = vld [vmem:[#allocation5 + $0x58] sm:$0xff]
    %v74 = vld [vmem:[#allocation5 + $0x60] sm:$0xff]
    %v75 = vld [vmem:[#allocation5 + $0x68] sm:$0xff]
    %v76 = vld [vmem:[#allocation5 + $0x70] sm:$0xff]
    %v77 = vld [vmem:[#allocation5 + $0x78] sm:$0xff]
    %v78 = vadd.f32 %v46, %v62
    %v79 = vadd.f32 %v47, %v63
    %v80 = vadd.f32 %v48, %v64
    %v81 = vadd.f32 %v49, %v65
    %v82 = vadd.f32 %v50, %v66
    %v83 = vadd.f32 %v51, %v67
    %v84 = vadd.f32 %v52, %v68
    %v85 = vadd.f32 %v53, %v69
    %v86 = vadd.f32 %v54, %v70
    %v87 = vadd.f32 %v55, %v71
    %v88 = vadd.f32 %v56, %v72
    %v89 = vadd.f32 %v57, %v73
    %v90 = vadd.f32 %v58, %v74
    %v91 = vadd.f32 %v59, %v75
    %v92 = vadd.f32 %v60, %v76
    %v93 = vadd.f32 %v61, %v77
    %v94 = vld [vmem:[#allocation7] sm:$0x1]
    %v95 = vld [vmem:[#allocation7 + $0x1] sm:$0x1]
    %v96 = vadd.f32 %v78, %v79
    %v97 = vadd.f32 %v96, %v80
    %v98 = vadd.f32 %v97, %v81
    %v99 = vadd.f32 %v98, %v82
    %v100 = vadd.f32 %v99, %v83
    %v101 = vadd.f32 %v100, %v84
    %v102 = vadd.f32 %v101, %v85
    %v103 = vrot.slane %v102, 4
    %v104 = vadd.f32 %v102, %v103
    %v105 = vrot.slane %v104, 2
    %v106 = vadd.f32 %v104, %v105
    %v107 = vrot.slane %v106, 1
    %v108 = vadd.f32 %v106, %v107
    %v109 = vadd.f32 %v86, %v87
    %v110 = vadd.f32 %v109, %v88
    %v111 = vadd.f32 %v110, %v89
    %v112 = vadd.f32 %v111, %v90
    %v113 = vadd.f32 %v112, %v91
    %v114 = vadd.f32 %v113, %v92
    %v115 = vadd.f32 %v114, %v93
    %v116 = vrot.slane %v115, 4
    %v117 = vadd.f32 %v115, %v116
    %v118 = vrot.slane %v117, 2
    %v119 = vadd.f32 %v117, %v118
    %v120 = vrot.slane %v119, 1
    %v121 = vadd.f32 %v119, %v120
    %v122 = vadd.f32 %v94, %v108
    %v123 = vadd.f32 %v95, %v121
    %124 = vst [vmem:[#allocation7] sm:$0x1] %v122
    %125 = vst [vmem:[#allocation7 + $0x1] sm:$0x1] %v123
    // Predicated region
    $region22: #{tpu_custom_call.1} parent=1 // pred_check
      _
    $region23: #{tpu_custom_call.1} parent=1 // pred_check_branch
      %127 = sbr.rel (0) target = $region25
    $region24: #{tpu_custom_call.1} parent=1 // pred_region
      %s129 = ssub.s32 32, 32
      %130 = vsyncadd [#allocation4], %s129
      %s131 = sshll.u32 [#allocation7], 4
      %s132 = int_to_ptr.vmem [resolvable:$true] %s131
      %137 = dma.vmem_to_hbm [thread:$0]  %s132, 32, %s2, [#allocation4], 16, 16, 1
    $region25: #{tpu_custom_call.1} parent=1 // pred_fallthru
      _
    // Predicated region
    $region26: #{tpu_custom_call.1} parent=1 // pred_check
      _
    $region27: #{tpu_custom_call.1} parent=1 // pred_check_branch
      %139 = sbr.rel (0) target = $region29
    $region28: #{tpu_custom_call.1} parent=1 // pred_region
      %140 = dma.done [#allocation4], 32
    $region29: #{tpu_custom_call.1} parent=1 // pred_fallthru
      _
    %141 = vsyncpa [#allocation3], 1
    %142 = vsyncpa [#allocation6], 1
    %143 = vsyncpa [#allocation4], 1

</llo_original>
